<compile_context>
chip_gen: v7x
topology: tpu7x:2x2x1
jax: 0.10.0
libtpu: 0.0.40
codegen_flags: <defaults>
</compile_context>

<pallas_src>
import jax
import jax.numpy as jnp
import numpy as np
from jax.experimental import pallas as pl
from jax.experimental.pallas import tpu as pltpu

_LANES = 128
# Row cap per block: 2048 rows x 128 lanes = 256K batch elements per block
# (512 KiB per slab block).  Single-step kernel: 5 blocks x 2 buffers
# -> ~10 MiB double-buffered, under the v5e 16 MiB scoped-VMEM default while
# big enough to amortize the ~0.35 us per-grid-step overhead on v6e/v7x.
_MAX_BLOCK_ROWS = 2048
# Target >= this many grid steps along the (parallel) batch axis when the
# batch is large enough, so v7x can shard blocks across both TensorCores
# (>= 4 per TC) and the pipeline always has multiple blocks in flight.
_MIN_GRID_STEPS = 8


def _round_up(a: int, b: int) -> int:
    return ((a + b - 1) // b) * b


def _choose_block_rows(num_rows: int, cap: int = _MAX_BLOCK_ROWS) -> int:
    """Rows per block: full slab if tiny, else a multiple of 8 sized for
    >= _MIN_GRID_STEPS grid steps, capped for the VMEM budget above."""
    if num_rows <= 8:
        return num_rows                      # block == full array (allowed)
    tr = _round_up(-(-num_rows // _MIN_GRID_STEPS), 8)
    return max(8, min(tr, cap))


def _pack_scalars(dyn_params, dyn_bias, dt):
    """[dt, c1, c2, bth, bdth].

    c1 = +3*g/(2*l)  (sign folded via sin(th+pi) == -sin(th)),
    c2 = 3/(m*l^2).  g is forced to 1.0, matching PendulumDynamics.eval().
    """
    g = jnp.float32(1.0)                                   # eval() overrides g
    m = jnp.asarray(dyn_params[1], jnp.float32)
    l = jnp.asarray(dyn_params[2], jnp.float32)
    return jnp.stack([
        jnp.asarray(dt, jnp.float32),
        3.0 * g / (2.0 * l),
        3.0 / (m * l * l),
        jnp.asarray(dyn_bias[0], jnp.float32),
        jnp.asarray(dyn_bias[1], jnp.float32),
    ])


# --------------------------------------------------------------------------
# Single-step kernel on dense slabs.
# --------------------------------------------------------------------------
def _step_kernel(sc_ref, th_ref, dth_ref, u_ref, th_o_ref, dth_o_ref):
    dt = sc_ref[0]
    c1 = sc_ref[1]
    c2 = sc_ref[2]
    bth = sc_ref[3]
    bdth = sc_ref[4]

    th = th_ref[...]            # (TR, 128) fully dense vregs
    dth = dth_ref[...]
    ddth = c1 * jnp.sin(th) + c2 * u_ref[...]

    th_o_ref[...] = th + dt * dth + bth          # unmasked full-tile stores
    dth_o_ref[...] = dth + dt * ddth + bdth


def pendulum_step_slabs(th, dth, u, dyn_params, dyn_bias, dt, *, block_rows=None):
    """Fast path: th/dth/u are (R, 128) f32 slabs (batch laid out densely).

    Returns (th', dth') slabs.  Zero layout plumbing around the kernel — use
    this (or the fused rollout below) when stepping repeatedly.
    """
    assert th.shape == dth.shape == u.shape and th.shape[-1] == _LANES
    num_rows = th.shape[0]
    tr = block_rows if block_rows is not None else _choose_block_rows(num_rows)
    n_blocks = -(-num_rows // tr)
    scalars = _pack_scalars(dyn_params, dyn_bias, dt)

    slab_spec = pl.BlockSpec((tr, _LANES), lambda i: (i, 0))
    out_shape = jax.ShapeDtypeStruct((num_rows, _LANES), jnp.float32)

    return pl.pallas_call(
        _step_kernel,
        out_shape=(out_shape, out_shape),
        grid=(n_blocks,),
        in_specs=[
            pl.BlockSpec(memory_space=pltpu.MemorySpace.SMEM),   # scalars
            slab_spec,                                           # th
            slab_spec,                                           # dth
            slab_spec,                                           # u
        ],
        out_specs=(slab_spec, slab_spec),
        compiler_params=pltpu.CompilerParams(
            dimension_semantics=("parallel",),   # v7x: shard batch blocks over both TCs
        ),
    )(scalars, th, dth, u)


# --------------------------------------------------------------------------
# Fused T-step rollout: state resident in VMEM scratch, u streamed per step.
# --------------------------------------------------------------------------
def _rollout_kernel(sc_ref, th0_ref, dth0_ref, u_ref, th_tr_ref, dth_tr_ref,
                    th_s, dth_s):
    t = pl.program_id(1)
    dt = sc_ref[0]
    c1 = sc_ref[1]
    c2 = sc_ref[2]
    bth = sc_ref[3]
    bdth = sc_ref[4]

    @pl.when(t == 0)
    def _():                                  # load initial state for this batch block
        th_s[...] = th0_ref[...]
        dth_s[...] = dth0_ref[...]

    th = th_s[...]
    dth = dth_s[...]
    ddth = c1 * jnp.sin(th) + c2 * u_ref[0]
    th_new = th + dt * dth + bth
    dth_new = dth + dt * ddth + bdth

    th_s[...] = th_new                        # state stays resident in VMEM across t
    dth_s[...] = dth_new
    th_tr_ref[0, :, :] = th_new
    dth_tr_ref[0, :, :] = dth_new


def pendulum_rollout_slabs(th0, dth0, u_seq, dyn_params, dyn_bias, dt, *,
                           block_rows=None):
    """T fused timesteps in one pallas_call (review item: rollout fusion).

    th0/dth0: (R,128) slabs; u_seq: (T,R,128).  Returns two (T,R,128) state
    trajectories.  The batch axis is the outer "parallel" grid axis; the time
    axis is the inner "arbitrary" axis with the state carried in VMEM scratch,
    so the state never round-trips through HBM between steps.
    """
    assert th0.shape == dth0.shape and th0.shape[-1] == _LANES
    T, num_rows, lanes = u_seq.shape
    assert lanes == _LANES and num_rows == th0.shape[0]
    tr = block_rows if block_rows is not None else _choose_block_rows(num_rows, cap=1024)
    n_blocks = -(-num_rows // tr)
    scalars = _pack_scalars(dyn_params, dyn_bias, dt)

    state_spec = pl.BlockSpec((tr, _LANES), lambda i, t: (i, 0))        # resident per block
    seq_spec = pl.BlockSpec((1, tr, _LANES), lambda i, t: (t, i, 0))    # streamed per step
    traj_shape = jax.ShapeDtypeStruct((T, num_rows, _LANES), jnp.float32)

    return pl.pallas_call(
        _rollout_kernel,
        out_shape=(traj_shape, traj_shape),
        grid=(n_blocks, T),                         # batch outer, time inner
        in_specs=[
            pl.BlockSpec(memory_space=pltpu.MemorySpace.SMEM),
            state_spec, state_spec, seq_spec,
        ],
        out_specs=(seq_spec, seq_spec),
        scratch_shapes=[pltpu.VMEM((tr, _LANES), jnp.float32),
                        pltpu.VMEM((tr, _LANES), jnp.float32)],
        compiler_params=pltpu.CompilerParams(
            dimension_semantics=("parallel", "arbitrary"),
        ),
    )(scalars, th0, dth0, u_seq)


# --------------------------------------------------------------------------
# PyTorch-contract wrapper: x (N,2), u (N,1) -> (N,2).
# --------------------------------------------------------------------------
def pendulum_forward(x, u, dyn_params, dyn_bias, dt, *, block_rows=None):
    """Drop-in equivalent of PendulumDynamics.forward / eval.

    The transpose/pad/slab reshape below is the one-time layout conversion the
    perf review flags; it fuses under jit.  For repeated stepping keep the
    state in slab form (pendulum_step_slabs) or fuse the whole horizon
    (pendulum_rollout_slabs) instead of paying this per call.
    """
    if x.ndim == 1:
        x = x[None, :]
        u = jnp.atleast_1d(u)[None, :]
    n = x.shape[0]
    n_pad = _round_up(n, _LANES)
    num_rows = n_pad // _LANES

    xt = x.astype(jnp.float32).T                    # (2, N)
    uf = u.astype(jnp.float32).reshape(-1)          # (N,)
    if n_pad != n:
        xt = jnp.pad(xt, ((0, 0), (0, n_pad - n)))
        uf = jnp.pad(uf, (0, n_pad - n))
    th = xt[0].reshape(num_rows, _LANES)
    dth = xt[1].reshape(num_rows, _LANES)
    us = uf.reshape(num_rows, _LANES)

    th_o, dth_o = pendulum_step_slabs(th, dth, us, dyn_params, dyn_bias, dt,
                                      block_rows=block_rows)
    return jnp.stack([th_o.reshape(-1)[:n], dth_o.reshape(-1)[:n]], axis=-1)


# --------------------------------------------------------------------------
# Pure-JAX references (literal transcription of the PyTorch eval()).
# --------------------------------------------------------------------------
def pendulum_forward_ref(x, u, dyn_params, dyn_bias, dt):
    g = jnp.float32(1.0)
    m = dyn_params[1]
    l = dyn_params[2]
    th = x[:, 0:1]
    dth = x[:, 1:2]
    ddth = -3.0 * g / (2.0 * l) * jnp.sin(th + np.pi) + 3.0 * u / (m * l ** 2.0)
    th_res = th + dt * dth + dyn_bias[0]
    dth_res = dth + dt * ddth + dyn_bias[1]
    return jnp.concatenate([th_res, dth_res], axis=1)


def pendulum_rollout_ref(x0, u_seq, dyn_params, dyn_bias, dt):
    outs = []
    x = x0
    for t in range(u_seq.shape[0]):
        x = pendulum_forward_ref(x, u_seq[t], dyn_params, dyn_bias, dt)
        outs.append(x)
    return jnp.stack(outs, axis=0)


if __name__ == "__main__":
    dt = 0.05
    dyn_params = jnp.array([9.8, 1.0, 1.0], dtype=jnp.float32)   # [g, m, l] (g ignored in eval)
    dyn_bias = jnp.array([0.01, -0.02], dtype=jnp.float32)       # [bth, bdth]

    key = jax.random.PRNGKey(0)
    ks = jax.random.split(key, 8)

    # 1) Small batch through the PyTorch-contract wrapper (jitted so the
    #    one-time layout conversion fuses around the kernel).
    N = 8
    x = (2.0 * np.pi * jax.random.uniform(ks[0], (N, 2)) - np.pi).astype(jnp.float32)
    u = (4.0 * jax.random.uniform(ks[1], (N, 1)) - 2.0).astype(jnp.float32)
    out = jax.block_until_ready(jax.jit(pendulum_forward)(x, u, dyn_params, dyn_bias, dt))
    ref = pendulum_forward_ref(x, u, dyn_params, dyn_bias, dt)
    np.testing.assert_allclose(np.asarray(out), np.asarray(ref), rtol=1e-5, atol=1e-5)

    # 2) Non-multiple-of-128 batch with forced small blocks: exercises the pad
    #    path, a multi-block grid, and a ragged last block (no explicit
    #    zero+scatter pad of the whole array as in the old version).
    N2 = 1900                     # pads to 1920 -> R = 15 rows; block_rows=8 -> 2 blocks
    x2 = (2.0 * np.pi * jax.random.uniform(ks[2], (N2, 2)) - np.pi).astype(jnp.float32)
    u2 = (4.0 * jax.random.uniform(ks[3], (N2, 1)) - 2.0).astype(jnp.float32)
    out2 = jax.block_until_ready(
        pendulum_forward(x2, u2, dyn_params, dyn_bias, dt, block_rows=8))
    ref2 = pendulum_forward_ref(x2, u2, dyn_params, dyn_bias, dt)
    np.testing.assert_allclose(np.asarray(out2), np.asarray(ref2), rtol=1e-5, atol=1e-5)

    # 3) Slab-native fast path: no wrapper plumbing at all.
    N3 = 512                      # R = 4 rows
    R3 = N3 // _LANES
    th3 = (2.0 * np.pi * jax.random.uniform(ks[4], (R3, _LANES)) - np.pi).astype(jnp.float32)
    dth3 = (2.0 * jax.random.uniform(ks[5], (R3, _LANES)) - 1.0).astype(jnp.float32)
    u3 = (4.0 * jax.random.uniform(ks[6], (R3, _LANES)) - 2.0).astype(jnp.float32)
    th_o, dth_o = jax.block_until_ready(
        pendulum_step_slabs(th3, dth3, u3, dyn_params, dyn_bias, dt))
    x3 = jnp.stack([th3.reshape(-1), dth3.reshape(-1)], axis=-1)
    ref3 = pendulum_forward_ref(x3, u3.reshape(-1, 1), dyn_params, dyn_bias, dt)
    np.testing.assert_allclose(np.asarray(th_o.reshape(-1)), np.asarray(ref3[:, 0]),
                               rtol=1e-5, atol=1e-5)
    np.testing.assert_allclose(np.asarray(dth_o.reshape(-1)), np.asarray(ref3[:, 1]),
                               rtol=1e-5, atol=1e-5)

    # 4) Fused T-step rollout in a single pallas_call (state resident in VMEM).
    T = 7
    N4 = 640                      # R = 5 rows (single batch block)
    R4 = N4 // _LANES
    th0 = (2.0 * np.pi * jax.random.uniform(ks[7], (R4, _LANES)) - np.pi).astype(jnp.float32)
    dth0 = jnp.zeros((R4, _LANES), jnp.float32)
    u_seq = (4.0 * jax.random.uniform(jax.random.PRNGKey(1), (T, R4, _LANES)) - 2.0
             ).astype(jnp.float32)
    th_tr, dth_tr = jax.block_until_ready(
        pendulum_rollout_slabs(th0, dth0, u_seq, dyn_params, dyn_bias, dt))
    x0 = jnp.stack([th0.reshape(-1), dth0.reshape(-1)], axis=-1)
    ref_tr = pendulum_rollout_ref(x0, u_seq.reshape(T, -1, 1), dyn_params, dyn_bias, dt)
    np.testing.assert_allclose(np.asarray(th_tr.reshape(T, -1)), np.asarray(ref_tr[:, :, 0]),
                               rtol=1e-5, atol=1e-5)
    np.testing.assert_allclose(np.asarray(dth_tr.reshape(T, -1)), np.asarray(ref_tr[:, :, 1]),
                               rtol=1e-5, atol=1e-5)

    print("KERNEL_OK")
</pallas_src>

<mosaic_0001>
module attributes {stable_mosaic.version = 11 : i64} {
  func.func @_step_kernel(%arg0: i32, %arg1: memref<5xf32, #tpu.memory_space<smem>>, %arg2: memref<1x128xf32, #tpu.memory_space<vmem>>, %arg3: memref<1x128xf32, #tpu.memory_space<vmem>>, %arg4: memref<1x128xf32, #tpu.memory_space<vmem>>, %arg5: memref<1x128xf32, #tpu.memory_space<vmem>>, %arg6: memref<1x128xf32, #tpu.memory_space<vmem>>) attributes {dimension_semantics = [#tpu.dimension_semantics<parallel>], iteration_bounds = array<i64: 1>, scalar_prefetch = 0 : i64, scratch_operands = 0 : i64, tpu.core_type = #tpu.core_type<tc>, window_params = [{transform_indices = @transform_0, window_bounds = array<i64: 5>}, {transform_indices = @transform_1, window_bounds = array<i64: 1, 128>}, {transform_indices = @transform_2, window_bounds = array<i64: 1, 128>}, {transform_indices = @transform_3, window_bounds = array<i64: 1, 128>}, {transform_indices = @transform_4, window_bounds = array<i64: 1, 128>}, {transform_indices = @transform_5, window_bounds = array<i64: 1, 128>}]} {
    %c0 = arith.constant 0 : index
    %0 = memref.load %arg1[%c0] : memref<5xf32, #tpu.memory_space<smem>>
    %c1 = arith.constant 1 : index
    %1 = memref.load %arg1[%c1] : memref<5xf32, #tpu.memory_space<smem>>
    %c2 = arith.constant 2 : index
    %2 = memref.load %arg1[%c2] : memref<5xf32, #tpu.memory_space<smem>>
    %c3 = arith.constant 3 : index
    %3 = memref.load %arg1[%c3] : memref<5xf32, #tpu.memory_space<smem>>
    %c4 = arith.constant 4 : index
    %4 = memref.load %arg1[%c4] : memref<5xf32, #tpu.memory_space<smem>>
    %c0_0 = arith.constant 0 : index
    %c0_1 = arith.constant 0 : index
    %5 = vector.load %arg2[%c0_0, %c0_1] : memref<1x128xf32, #tpu.memory_space<vmem>>, vector<1x128xf32>
    %c0_2 = arith.constant 0 : index
    %c0_3 = arith.constant 0 : index
    %6 = vector.load %arg3[%c0_2, %c0_3] : memref<1x128xf32, #tpu.memory_space<vmem>>, vector<1x128xf32>
    %7 = math.sin %5 : vector<1x128xf32>
    %8 = vector.broadcast %1 : f32 to vector<1x128xf32>
    %9 = arith.mulf %8, %7 : vector<1x128xf32>
    %c0_4 = arith.constant 0 : index
    %c0_5 = arith.constant 0 : index
    %10 = vector.load %arg4[%c0_4, %c0_5] : memref<1x128xf32, #tpu.memory_space<vmem>>, vector<1x128xf32>
    %11 = vector.broadcast %2 : f32 to vector<1x128xf32>
    %12 = arith.mulf %11, %10 : vector<1x128xf32>
    %13 = arith.addf %9, %12 : vector<1x128xf32>
    %14 = vector.broadcast %0 : f32 to vector<1x128xf32>
    %15 = arith.mulf %14, %6 : vector<1x128xf32>
    %16 = arith.addf %5, %15 : vector<1x128xf32>
    %17 = vector.broadcast %3 : f32 to vector<1x128xf32>
    %18 = arith.addf %16, %17 : vector<1x128xf32>
    %c0_6 = arith.constant 0 : index
    %c0_7 = arith.constant 0 : index
    %19 = vector.load %arg5[%c0_6, %c0_7] : memref<1x128xf32, #tpu.memory_space<vmem>>, vector<1x128xf32>
    tpu.vector_store %arg5[%c0_6, %c0_7], %18 {strides = array<i32>} : memref<1x128xf32, #tpu.memory_space<vmem>>, vector<1x128xf32>,
    %20 = vector.broadcast %0 : f32 to vector<1x128xf32>
    %21 = arith.mulf %20, %13 : vector<1x128xf32>
    %22 = arith.addf %6, %21 : vector<1x128xf32>
    %23 = vector.broadcast %4 : f32 to vector<1x128xf32>
    %24 = arith.addf %22, %23 : vector<1x128xf32>
    %c0_8 = arith.constant 0 : index
    %c0_9 = arith.constant 0 : index
    %25 = vector.load %arg6[%c0_8, %c0_9] : memref<1x128xf32, #tpu.memory_space<vmem>>, vector<1x128xf32>
    tpu.vector_store %arg6[%c0_8, %c0_9], %24 {strides = array<i32>} : memref<1x128xf32, #tpu.memory_space<vmem>>, vector<1x128xf32>,
    return
  }
  func.func @transform_0(%arg0: i32) -> i32 {
    %c0_i32 = arith.constant 0 : i32
    %c0_i32_0 = arith.constant 0 : i32
    return %c0_i32 : i32
  }
  func.func @transform_1(%arg0: i32) -> (i32, i32) {
    %c0_i32 = arith.constant 0 : i32
    %c0_i32_0 = arith.constant 0 : i32
    return %arg0, %c0_i32 : i32, i32
  }
  func.func @transform_2(%arg0: i32) -> (i32, i32) {
    %c0_i32 = arith.constant 0 : i32
    %c0_i32_0 = arith.constant 0 : i32
    return %arg0, %c0_i32 : i32, i32
  }
  func.func @transform_3(%arg0: i32) -> (i32, i32) {
    %c0_i32 = arith.constant 0 : i32
    %c0_i32_0 = arith.constant 0 : i32
    return %arg0, %c0_i32 : i32, i32
  }
  func.func @transform_4(%arg0: i32) -> (i32, i32) {
    %c0_i32 = arith.constant 0 : i32
    %c0_i32_0 = arith.constant 0 : i32
    return %arg0, %c0_i32 : i32, i32
  }
  func.func @transform_5(%arg0: i32) -> (i32, i32) {
    %c0_i32 = arith.constant 0 : i32
    %c0_i32_0 = arith.constant 0 : i32
    return %arg0, %c0_i32 : i32, i32
  }
}

</mosaic_0001>

<llo_original>
// kernel: pendulum_forward.1
$region0: #{pendulum_forward.1}
  #allocation0 [shape = 'u32[]', space=smem, size = 0x4, offset = 0x4, fixed_abs, tag = 'smem constant byte address 0x4 - core index']
  #allocation1 [shape = 'u32[144,128]{1,0:T(1,128)}', space=vmem, size = 0x12000, scoped, tag = 'internal scratch']
  %s0 = inlined_call_operand.vmem [shape: f32[5], index: 0, kind: input, shape index: {}]
  %s1 = inlined_call_operand.vmem [shape: f32[1,128], index: 1, kind: input, shape index: {}]
  %s2 = inlined_call_operand.vmem [shape: f32[1,128], index: 2, kind: input, shape index: {}]
  %s3 = inlined_call_operand.vmem [shape: f32[1,128], index: 3, kind: input, shape index: {}]
  %s4 = inlined_call_operand.vmem [shape: f32[1,128], index: 4, kind: output, shape index: {0}]
  %s5 = inlined_call_operand.vmem [shape: f32[1,128], index: 5, kind: output, shape index: {1}]
  %6 = xla_tuple %s4, %s5
  %s7 = sld [smem:[#allocation0]]
  $region38: #{pendulum_forward.1} parent=0
    _
  %s9 = ssub.s32 1, %s7
  %s10 = scalar_select 0, %s9, %s7
  $region1: #{pendulum_forward.1} parent=0
    #allocation2 [shape = 'u8[512]{0}', space=smem, size = 0x200, scoped, tag = 'input window, operand 0, single buffered']
    #allocation3 [shape = 's32[1]{0}', space=sflag, size = 0x4, scoped, tag = 'scoped memory for pendulum_forward.1']
    %11 = vsyncpa [#allocation3], 0
    // Predicated region
    $region2: #{pendulum_forward.1} parent=1 // pred_check
      _
    $region3: #{pendulum_forward.1} parent=1 // pred_check_branch
      %13 = sbr.rel (0) target = $region5
    $region4: #{pendulum_forward.1} parent=1 // pred_region
      %s15 = ssub.s32 16, 16
      %16 = vsyncadd [#allocation3], %s15
      %s18 = sshll.u32 %s0, 4
      %s19 = int_to_ptr.vmem [resolvable:$true] %s18
      %21 = dma.vmem_to_smem %s19, 16, [#allocation2], [#allocation3]
    $region5: #{pendulum_forward.1} parent=1 // pred_fallthru
      _
    // Predicated region
    $region6: #{pendulum_forward.1} parent=1 // pred_check
      _
    $region7: #{pendulum_forward.1} parent=1 // pred_check_branch
      %23 = sbr.rel (0) target = $region9
    $region8: #{pendulum_forward.1} parent=1 // pred_region
      _
    $region9: #{pendulum_forward.1} parent=1 // pred_fallthru
      _
    // Predicated region
    $region10: #{pendulum_forward.1} parent=1 // pred_check
      _
    $region11: #{pendulum_forward.1} parent=1 // pred_check_branch
      %25 = sbr.rel (0) target = $region13
    $region12: #{pendulum_forward.1} parent=1 // pred_region
      _
    $region13: #{pendulum_forward.1} parent=1 // pred_fallthru
      _
    // Predicated region
    $region14: #{pendulum_forward.1} parent=1 // pred_check
      _
    $region15: #{pendulum_forward.1} parent=1 // pred_check_branch
      %27 = sbr.rel (0) target = $region17
    $region16: #{pendulum_forward.1} parent=1 // pred_region
      _
    $region17: #{pendulum_forward.1} parent=1 // pred_fallthru
      _
    // Predicated region
    $region18: #{pendulum_forward.1} parent=1 // pred_check
      _
    $region19: #{pendulum_forward.1} parent=1 // pred_check_branch
      %29 = sbr.rel (0) target = $region21
    $region20: #{pendulum_forward.1} parent=1 // pred_region
      %30 = dma.done [#allocation3], 16
    $region21: #{pendulum_forward.1} parent=1 // pred_fallthru
      _
    %31 = sfence
    %s32 = sld [smem:[#allocation2]]
    %s33 = sld [smem:[#allocation2 + $0x1]]
    %s34 = sld [smem:[#allocation2 + $0x2]]
    %s35 = sld [smem:[#allocation2 + $0x3]]
    %s36 = sld [smem:[#allocation2 + $0x4]]
    %v37 = vld [vmem:[%s1] sm:$0x1]
    %v38 = vld [vmem:[%s2] sm:$0x1]
    %v39 = vand.u32 2147483647, %v37
    %vm40 = vcmp.le.f32.partialorder %v39, 0.7853982
    %vm41 = vcmp.lt.s32.totalorder %v37, 0
    %v42 = vand.u32 %v37, 2139095040
    %v43 = vshrl.u32 %v42, 23
    %v44 = vsub.s32 %v43, 127
    %v45 = vand.u32 2147483647, %v37
    %v46 = vand.u32 %v45, 8388607
    %v47 = vor.u32 %v46, 8388608
    %v48 = vsub.s32 0, %v47
    %v49 = vadd.s32 %v44, 1
    %vm50 = vcmp.gt.s32.totalorder %v49, 0
    %v51 = vsel %vm50, %v49, 0
    %v52 = vshrl.u32 %v51, 5
    %v53 = vand.u32 %v51, 31
    %v54 = vsub.s32 32, %v53
    %v55 = vshrl.u32 683565275, %v54
    %v56 = vshll.u32 683565275, %v53
    %v57 = vshrl.u32 2475754826, %v54
    %v58 = vor.u32 %v56, %v57
    %v59 = vshll.u32 2475754826, %v53
    %v60 = vshrl.u32 2131351028, %v54
    %v61 = vor.u32 %v59, %v60
    %v62 = vshll.u32 2131351028, %v53
    %v63 = vshrl.u32 2102212464, %v54
    %v64 = vor.u32 %v62, %v63
    %v65 = vshll.u32 2102212464, %v53
    %v66 = vshrl.u32 920167782, %v54
    %v67 = vor.u32 %v65, %v66
    %v68 = vshll.u32 920167782, %v53
    %v69 = vshrl.u32 1326507024, %v54
    %v70 = vor.u32 %v68, %v69
    %vm71 = vcmp.lt.s32.totalorder %v52, 1
    %vm72 = vcmp.lt.s32.totalorder %v52, 2
    %vm73 = vcmp.lt.s32.totalorder %v52, 3
    %vm74 = vcmp.lt.s32.totalorder %v52, 4
    %v75 = vsel %vm71, %v55, %v58
    %v76 = vsel %vm74, %v64, 2102212464
    %v77 = vsel %vm73, %v61, %v76
    %v78 = vsel %vm72, %v75, %v77
    %v79 = vsel %vm71, %v58, %v61
    %v80 = vsel %vm74, %v67, 920167782
    %v81 = vsel %vm73, %v64, %v80
    %v82 = vsel %vm72, %v79, %v81
    %v83 = vsel %vm71, %v61, %v64
    %v84 = vsel %vm74, %v70, 1326507024
    %v85 = vsel %vm73, %v67, %v84
    %v86 = vsel %vm72, %v83, %v85
    %v87 = vshll.u32 %v47, 8
    %v88 = vmul.u32.u64.compose %v87, %v86
    %v89 = vextract.low.u32 %v88
    %v90 = vextract.high.u32 %v88
    %v91 = vmul.u32.u64.compose %v87, %v82
    %v92 = vextract.low.u32 %v91
    %v93 = vextract.high.u32 %v91
    %v94 = vmul.u32 %v87, %v78
    %v95 = vadd.s32 %v90, %v92
    %vm96 = vc.u32 %v90, %v92
    %v97 = vadd.s32 %v93, 1
    %v98 = vsel %vm96, %v97, %v93
    %v99 = vadd.s32 %v94, %v98
    %v100 = vadd.s32 %v99, 536870912
    %v101 = vshrl.u32 %v100, 30
    %v102 = vshll.u32 %v101, 30
    %v103 = vsub.s32 %v99, %v102
    %vm104 = vcmp.lt.s32.totalorder %v103, 0
    %v105 = vsub.s32 0, %v103
    %v106 = vsel %vm104, %v105, %v103
    %v107 = vclz %v106
    %v108 = vsub.s32 %v107, 2
    %vm109 = vcmp.gt.s32.totalorder 0, %v108
    %v110 = vsel %vm109, 0, %v108
    %v111 = vsub.s32 32, %v110
    %v112 = vshll.u32 %v103, %v110
    %v113 = vshrl.u32 %v95, %v111
    %v114 = vor.u32 %v112, %v113
    %v115 = vsub.s32 4294967266, %v110
    %v116 = vadd.s32 %v115, 127
    %v117 = vshll.u32 %v116, 23
    %v118 = vor.u32 4788187, %v117
    %v119 = vand.u32 2147483647, %v118
    %v121 = vcvt.s32.f32 %v114
    %v122 = vmul.f32 %v121, %v119
    %v123 = vxor.u32 %v122, 2147483648
    %v124 = vsel %vm41, %v123, %v122
    %v125 = vsub.s32 4, %v101
    %v126 = vsel %vm41, %v125, %v101
    %v127 = vsel %vm40, %v37, %v124
    %v128 = vsel %vm40, 0, %v126
    %v129 = vcosq.f32.pop %v127
    %v130 = vsinq.f32.pop %v127
    %vm131 = vweird.f32 %v37
    %v132 = vadd.s32 %v128, 3
    %v133 = vand.u32 %v132, 3
    %vm134 = vcmp.lt.s32.totalorder %v133, 2
    %vm135 = vcmp.eq.s32.totalorder %v133, 0
    %v136 = vxor.u32 %v130, 2147483648
    %v137 = vsel %vm135, %v129, %v136
    %vm138 = vcmp.eq.s32.totalorder %v133, 2
    %v139 = vxor.u32 %v129, 2147483648
    %v140 = vsel %vm138, %v139, %v130
    %v141 = vsel %vm134, %v137, %v140
    %v142 = vsel %vm131, nan, %v141
    %v143 = vstv %s33
    %v144 = vmul.f32 %v143, %v142
    %v145 = vld [vmem:[%s3] sm:$0x1]
    %v146 = vstv %s34
    %v147 = vmul.f32 %v146, %v145
    %v148 = vadd.f32 %v144, %v147
    %v149 = vstv %s32
    %v150 = vmul.f32 %v149, %v38
    %v151 = vadd.f32 %v37, %v150
    %v152 = vstv %s35
    %v153 = vadd.f32 %v151, %v152
    %154 = vst [vmem:[%s4] sm:$0x1] %v153
    %v155 = vmul.f32 %v149, %v148
    %v156 = vadd.f32 %v38, %v155
    %v157 = vstv %s36
    %v158 = vadd.f32 %v156, %v157
    %159 = vst [vmem:[%s5] sm:$0x1] %v158
    // Predicated region
    $region22: #{pendulum_forward.1} parent=1 // pred_check
      _
    $region23: #{pendulum_forward.1} parent=1 // pred_check_branch
      %161 = sbr.rel (0) target = $region25
    $region24: #{pendulum_forward.1} parent=1 // pred_region
      _
    $region25: #{pendulum_forward.1} parent=1 // pred_fallthru
      _
    // Predicated region
    $region26: #{pendulum_forward.1} parent=1 // pred_check
      _
    $region27: #{pendulum_forward.1} parent=1 // pred_check_branch
      %163 = sbr.rel (0) target = $region29
    $region28: #{pendulum_forward.1} parent=1 // pred_region
      _
    $region29: #{pendulum_forward.1} parent=1 // pred_fallthru
      _
    // Predicated region
    $region30: #{pendulum_forward.1} parent=1 // pred_check
      _
    $region31: #{pendulum_forward.1} parent=1 // pred_check_branch
      %165 = sbr.rel (0) target = $region33
    $region32: #{pendulum_forward.1} parent=1 // pred_region
      _
    $region33: #{pendulum_forward.1} parent=1 // pred_fallthru
      _
    // Predicated region
    $region34: #{pendulum_forward.1} parent=1 // pred_check
      _
    $region35: #{pendulum_forward.1} parent=1 // pred_check_branch
      %167 = sbr.rel (0) target = $region37
    $region36: #{pendulum_forward.1} parent=1 // pred_region
      _
    $region37: #{pendulum_forward.1} parent=1 // pred_fallthru
      _
    %168 = vsyncpa [#allocation3], 1

</llo_original>
